<compile_context>
chip_gen: v7x
topology: tpu7x:2x2x1
jax: 0.10.0
libtpu: 0.0.40
codegen_flags: <defaults>
</compile_context>

<pallas_src>
import functools

import jax
import jax.numpy as jnp
import numpy as np
from jax.experimental import pallas as pl
from jax.experimental.pallas import tpu as pltpu

EPS = 1e-5  # nn.GroupNorm default eps


def _group_config(channels, num_groups=32):
    g = min(num_groups, channels)
    if channels % g != 0:
        g = channels // (channels // g)
    cpg = channels // g
    return g, cpg, cpg // 2


def _choose_tiles(B, G, cpg, L, itemsize, target_bytes=8 * 1024 * 1024):
    """Pick (batch_tile, group_tile).  ~8 MiB blocks amortize the ~0.35us/step
    pipeline overhead; in(2x) + out(2x) double-buffering of 8 MiB blocks stays
    well under a 48 MiB scoped-VMEM budget on v5e/v6e/v7x.  The grid keeps
    >=2 steps whenever possible so DMA/compute overlap (all chips) and both
    v7x TensorCores get work."""
    per_group_row = cpg * L * itemsize          # one group, one batch row
    per_batch = G * per_group_row               # one batch row, all groups

    def dense_g_tiles():
        # divisors of G keeping the x block (gt*cpg sublanes) and the output
        # block (gt on the second-to-last dim) sublane-dense.
        return [d for d in range(G, 0, -1) if G % d == 0 and (d % 8 == 0 or d == G)]

    if B * per_batch <= target_bytes:
        # Whole problem fits one block: split once so the grid has >=2 steps.
        if B >= 2:
            bt = B // 2
            while B % bt:
                bt -= 1
            return bt, G
        gt = next((d for d in dense_g_tiles() if d < G), G)
        return 1, gt

    if per_batch <= target_bytes:
        bt = min(B, max(1, target_bytes // per_batch))
        while B % bt:
            bt -= 1
        return bt, G            # grid already has >=2 batch steps here

    # One batch row exceeds the target: shrink the group tile.
    for d in dense_g_tiles():
        if d * per_group_row <= target_bytes:
            return 1, d
    # Nothing dense fits the target (very long L): take the smallest dense
    # group tile and let the caller raise vmem_limit_bytes accordingly.
    # TODO(synk): tile L (third "arbitrary" grid axis with a two-phase
    # stats/apply split) for sequences long enough that even one dense group
    # row misses VMEM.
    return 1, dense_g_tiles()[-1]


def hybrid_attn_kernel(x_ref, ca_w_ref, ca_b_ref, sa_w_ref, sa_b_ref,
                       gn_g_ref, gn_b_ref, o_ref, *, cpg, half, n_valid, lc):
    """x_ref block: (bt, gt*cpg, Lp) channel-major; o_ref block: (bt, cpg, gt, Lp)."""
    bt, ct, Lp = x_ref.shape
    gt = ct // cpg
    half2 = cpg - half
    inv_L = 1.0 / float(n_valid)
    inv_n = 1.0 / float(half2 * n_valid)
    n_chunks = Lp // lc

    # Hoisted (1, gt, 1) per-group scalar broadcasts (JAX does not CSE
    # broadcast_in_dim inside the unrolled loops below).
    ca_w = ca_w_ref[...][None]
    ca_b = ca_b_ref[...][None]
    sa_b = sa_b_ref[...][None]
    saw = sa_w_ref[...][None] * (1.0 / float(half2))   # fold the 1/half2 channel mean

    def slab(j, c0, width):
        # Rows {g*cpg + j : g in [0, gt)} -> (bt, gt, width); sublane-strided
        # VMEM read (the HBM->VMEM DMA of the x block is fully dense).
        # TODO(synk): confirm on a v7x bundle dump that this lowers to a single
        # strided vld; if it unrolls, switch to dense 8-sublane loads + selects.
        if width == Lp:
            v = x_ref[:, pl.ds(j, gt, stride=cpg), :]
        else:
            v = x_ref[:, pl.ds(j, gt, stride=cpg), pl.ds(c0, width)]
        return v.astype(jnp.float32)

    def store(j, c0, width, val):
        if width == Lp:
            o_ref[:, j, :, :] = val.astype(o_ref.dtype)
        else:
            o_ref[:, j, :, pl.ds(c0, width)] = val.astype(o_ref.dtype)

    # ---- phase 1: reductions over L (only (bt, gt, 1) results kept) ---------
    # channel attention: sigmoid(mean_L(x1_j) * w_g + b_g), per channel j
    cw = []
    for j in range(half):
        avg = jnp.sum(slab(j, 0, Lp), axis=-1, keepdims=True) * inv_L
        cw.append(jax.nn.sigmoid(avg * ca_w + ca_b))

    # GroupNorm(1, half2) statistics: single pass, f32 sum / sum-of-squares.
    s = jnp.zeros((bt, gt, 1), jnp.float32)
    ss = jnp.zeros((bt, gt, 1), jnp.float32)
    for j in range(half, cpg):
        xj = slab(j, 0, Lp)
        s = s + jnp.sum(xj, axis=-1, keepdims=True)
        ss = ss + jnp.sum(xj * xj, axis=-1, keepdims=True)
    mu = s * inv_n
    var = jnp.maximum(ss * inv_n - mu * mu, 0.0)   # guard E[x^2]-E[x]^2 cancellation
    rstd = jax.lax.rsqrt(var + EPS)

    # Algebraic fusion of GroupNorm affine + channel mean + spatial Linear(1,1):
    #   sw = sigmoid((1/half2) * sum_j((x_j - mu)*rstd*gamma_j + beta_j) * sa_w + sa_b)
    #      = sigmoid(sum_j a_j * x_j + b0)
    gamma_sum = jnp.sum(gn_g_ref[...], axis=-1, keepdims=True)[None]   # (1, gt, 1)
    beta_sum = jnp.sum(gn_b_ref[...], axis=-1, keepdims=True)[None]
    a = [rstd * saw * gn_g_ref[:, k:k + 1][None] for k in range(half2)]  # (bt, gt, 1)
    b0 = (beta_sum - rstd * mu * gamma_sum) * saw + sa_b                 # (bt, gt, 1)

    # ---- phase 2: apply + store, L-chunked (no full-length accumulator) -----
    for c in range(n_chunks):
        c0 = c * lc
        # x1 half: per-channel scalar weight
        for j in range(half):
            store(j, c0, lc, slab(j, c0, lc) * cw[j])
        # x2 half: spatial weight for this chunk, then multiply + store
        z = None
        for k in range(half2):
            t = slab(half + k, c0, lc) * a[k]
            z = t if z is None else z + t
        sw = jax.nn.sigmoid(z + b0)                                      # (bt, gt, lc)
        for k in range(half2):
            store(half + k, c0, lc, slab(half + k, c0, lc) * sw)


def hybrid_attention(x, params, num_groups=32):
    """x: (B, C, L). Returns (B, C, L), matching HybridAttentionModule.forward."""
    B, C, L = x.shape
    G, cpg, half = _group_config(C, num_groups)
    assert G * cpg == C, "unsupported channel count for this grouping scheme"
    assert cpg % 2 == 0 and cpg >= 2, "channels_per_group must be even (as in the PyTorch module)"
    half2 = cpg - half
    ca_w, ca_b, sa_w, sa_b, gn_g, gn_b = params

    # Pad L to a lane-dense multiple of 128: every load/store becomes an
    # unmasked 128-lane access.  Zero padding does not change any of the sums
    # the kernel uses; the kernel divides by the true L.
    Lp = ((L + 127) // 128) * 128
    xp = x if Lp == L else jnp.pad(x, ((0, 0), (0, 0), (0, Lp - L)))

    bt, gt = _choose_tiles(B, G, cpg, Lp, x.dtype.itemsize)
    ct = gt * cpg
    block_bytes = bt * ct * Lp * x.dtype.itemsize     # x block == output block size
    vmem_limit = int(max(48 * 1024 * 1024, 4 * block_bytes + 8 * 1024 * 1024))

    # Static L chunk for phase 2 (multiple of 128; Lp is a multiple of 128).
    if Lp <= 512:
        lc = Lp
    else:
        lc = next(d for d in (512, 256, 128) if Lp % d == 0)

    grid = (B // bt, G // gt)
    kernel = functools.partial(hybrid_attn_kernel, cpg=cpg, half=half,
                               n_valid=L, lc=lc)

    out4 = pl.pallas_call(
        kernel,
        out_shape=jax.ShapeDtypeStruct((B, cpg, G, Lp), x.dtype),
        grid=grid,
        in_specs=[
            pl.BlockSpec((bt, ct, Lp), lambda b, g: (b, g, 0)),     # x (channel-major)
            pl.BlockSpec((gt, 1), lambda b, g: (g, 0)),             # ca_w
            pl.BlockSpec((gt, 1), lambda b, g: (g, 0)),             # ca_b
            pl.BlockSpec((gt, 1), lambda b, g: (g, 0)),             # sa_w
            pl.BlockSpec((gt, 1), lambda b, g: (g, 0)),             # sa_b
            pl.BlockSpec((gt, half2), lambda b, g: (g, 0)),         # gn gamma
            pl.BlockSpec((gt, half2), lambda b, g: (g, 0)),         # gn beta
        ],
        out_specs=pl.BlockSpec((bt, cpg, gt, Lp), lambda b, g: (b, 0, g, 0)),
        compiler_params=pltpu.CompilerParams(
            dimension_semantics=("parallel", "parallel"),
            vmem_limit_bytes=vmem_limit,
        ),
    )(xp, ca_w, ca_b, sa_w, sa_b, gn_g, gn_b)

    # The channel shuffle (view->transpose(1,2)->view) is already folded into
    # the (B, cpg, G, L) output layout; this reshape is free.
    out = out4.reshape(B, C, Lp)
    return out if Lp == L else out[:, :, :L]


def hybrid_attention_ref(x, params, num_groups=32):
    """Pure-JAX reference matching the PyTorch module semantics."""
    B, C, L = x.shape
    G, cpg, half = _group_config(C, num_groups)
    ca_w, ca_b, sa_w, sa_b, gn_g, gn_b = params
    xg = x.reshape(B, G, cpg, L)
    x1 = xg[:, :, :half, :]
    x2 = xg[:, :, half:, :]
    cw = jax.nn.sigmoid(x1.mean(axis=3, keepdims=True) * ca_w[None, :, :, None]
                        + ca_b[None, :, :, None])
    x1e = x1 * cw
    mu = x2.mean(axis=(2, 3), keepdims=True)
    var = ((x2 - mu) ** 2).mean(axis=(2, 3), keepdims=True)
    x2n = (x2 - mu) / jnp.sqrt(var + EPS)
    x2n = x2n * gn_g[None, :, :, None] + gn_b[None, :, :, None]
    sw = jax.nn.sigmoid(x2n.mean(axis=2, keepdims=True) * sa_w[None, :, :, None]
                        + sa_b[None, :, :, None])
    x2e = x2 * sw
    out = jnp.concatenate([x1e, x2e], axis=2)          # (B, G, cpg, L)
    return out.transpose(0, 2, 1, 3).reshape(B, C, L)  # channel shuffle


def init_params(key, channels, num_groups=32):
    """Deterministic synthetic parameters (Linear(1,1) scalars + GroupNorm affine)."""
    G, cpg, half = _group_config(channels, num_groups)
    half2 = cpg - half
    ks = jax.random.split(key, 6)
    ca_w = jax.random.uniform(ks[0], (G, 1), jnp.float32, -1.0, 1.0)
    ca_b = jax.random.uniform(ks[1], (G, 1), jnp.float32, -1.0, 1.0)
    sa_w = jax.random.uniform(ks[2], (G, 1), jnp.float32, -1.0, 1.0)
    sa_b = jax.random.uniform(ks[3], (G, 1), jnp.float32, -1.0, 1.0)
    gn_g = 1.0 + 0.1 * jax.random.normal(ks[4], (G, half2), jnp.float32)
    gn_b = 0.1 * jax.random.normal(ks[5], (G, half2), jnp.float32)
    return (ca_w, ca_b, sa_w, sa_b, gn_g, gn_b)


if __name__ == "__main__":
    # small example: B=2, C=128, L=128 -> G=32 groups, 4 channels/group
    B, C, L = 2, 128, 128
    key = jax.random.PRNGKey(0)
    kx, kp = jax.random.split(key)
    x = jax.random.normal(kx, (B, C, L), jnp.float32)
    params = init_params(kp, C)

    out = hybrid_attention(x, params)
    out = jax.block_until_ready(out)

    ref = hybrid_attention_ref(x, params)
    np.testing.assert_allclose(np.asarray(out), np.asarray(ref), rtol=2e-5, atol=2e-5)

    print("KERNEL_OK")
</pallas_src>

<mosaic_0001>
module attributes {stable_mosaic.version = 11 : i64} {
  func.func @hybrid_attn_kernel(%arg0: i32, %arg1: i32, %arg2: memref<1x128x128xf32, #tpu.memory_space<vmem>>, %arg3: memref<32x1xf32, #tpu.memory_space<vmem>>, %arg4: memref<32x1xf32, #tpu.memory_space<vmem>>, %arg5: memref<32x1xf32, #tpu.memory_space<vmem>>, %arg6: memref<32x1xf32, #tpu.memory_space<vmem>>, %arg7: memref<32x2xf32, #tpu.memory_space<vmem>>, %arg8: memref<32x2xf32, #tpu.memory_space<vmem>>, %arg9: memref<1x4x32x128xf32, #tpu.memory_space<vmem>>) attributes {dimension_semantics = [#tpu.dimension_semantics<parallel>, #tpu.dimension_semantics<parallel>], iteration_bounds = array<i64: 2, 1>, scalar_prefetch = 0 : i64, scratch_operands = 0 : i64, tpu.core_type = #tpu.core_type<tc>, window_params = [{transform_indices = @transform_0, window_bounds = array<i64: 1, 128, 128>}, {transform_indices = @transform_1, window_bounds = array<i64: 32, 1>}, {transform_indices = @transform_2, window_bounds = array<i64: 32, 1>}, {transform_indices = @transform_3, window_bounds = array<i64: 32, 1>}, {transform_indices = @transform_4, window_bounds = array<i64: 32, 1>}, {transform_indices = @transform_5, window_bounds = array<i64: 32, 2>}, {transform_indices = @transform_6, window_bounds = array<i64: 32, 2>}, {transform_indices = @transform_7, window_bounds = array<i64: 1, 4, 32, 128>}]} {
    %c0 = arith.constant 0 : index
    %c0_0 = arith.constant 0 : index
    %0 = vector.load %arg3[%c0, %c0_0] : memref<32x1xf32, #tpu.memory_space<vmem>>, vector<32x1xf32>
    %1 = vector.shape_cast %0 : vector<32x1xf32> to vector<1x32x1xf32>
    %c0_1 = arith.constant 0 : index
    %c0_2 = arith.constant 0 : index
    %2 = vector.load %arg4[%c0_1, %c0_2] : memref<32x1xf32, #tpu.memory_space<vmem>>, vector<32x1xf32>
    %3 = vector.shape_cast %2 : vector<32x1xf32> to vector<1x32x1xf32>
    %c0_3 = arith.constant 0 : index
    %c0_4 = arith.constant 0 : index
    %4 = vector.load %arg6[%c0_3, %c0_4] : memref<32x1xf32, #tpu.memory_space<vmem>>, vector<32x1xf32>
    %5 = vector.shape_cast %4 : vector<32x1xf32> to vector<1x32x1xf32>
    %c0_5 = arith.constant 0 : index
    %c0_6 = arith.constant 0 : index
    %6 = vector.load %arg5[%c0_5, %c0_6] : memref<32x1xf32, #tpu.memory_space<vmem>>, vector<32x1xf32>
    %7 = vector.shape_cast %6 : vector<32x1xf32> to vector<1x32x1xf32>
    %cst = arith.constant 5.000000e-01 : f32
    %8 = vector.broadcast %cst : f32 to vector<1x32x1xf32>
    %9 = arith.mulf %7, %8 : vector<1x32x1xf32>
    %c0_7 = arith.constant 0 : index
    %c0_8 = arith.constant 0 : index
    %c0_9 = arith.constant 0 : index
    %10 = tpu.strided_load %arg2[%c0_7, %c0_8, %c0_9] {strides = array<i32: 1, 4, 1>} : memref<1x128x128xf32, #tpu.memory_space<vmem>>, vector<1x32x128xf32>
    %cst_10 = arith.constant dense<0.000000e+00> : vector<1x32xf32>
    %11 = vector.multi_reduction <add>, %10, %cst_10 [2] : vector<1x32x128xf32> to vector<1x32xf32>
    %12 = vector.shape_cast %11 : vector<1x32xf32> to vector<1x32x1xf32>
    %cst_11 = arith.constant 7.812500e-03 : f32
    %13 = vector.broadcast %cst_11 : f32 to vector<1x32x1xf32>
    %14 = arith.mulf %12, %13 : vector<1x32x1xf32>
    %15 = arith.mulf %14, %1 : vector<1x32x1xf32>
    %16 = arith.addf %15, %3 : vector<1x32x1xf32>
    %17 = arith.negf %16 : vector<1x32x1xf32>
    %18 = math.exp %17 : vector<1x32x1xf32>
    %cst_12 = arith.constant 1.000000e+00 : f32
    %19 = vector.broadcast %cst_12 : f32 to vector<1x32x1xf32>
    %20 = arith.addf %19, %18 : vector<1x32x1xf32>
    %21 = arith.divf %19, %20 : vector<1x32x1xf32>
    %c0_13 = arith.constant 0 : index
    %c1 = arith.constant 1 : index
    %c0_14 = arith.constant 0 : index
    %22 = tpu.strided_load %arg2[%c0_13, %c1, %c0_14] {strides = array<i32: 1, 4, 1>} : memref<1x128x128xf32, #tpu.memory_space<vmem>>, vector<1x32x128xf32>
    %cst_15 = arith.constant dense<0.000000e+00> : vector<1x32xf32>
    %23 = vector.multi_reduction <add>, %22, %cst_15 [2] : vector<1x32x128xf32> to vector<1x32xf32>
    %24 = vector.shape_cast %23 : vector<1x32xf32> to vector<1x32x1xf32>
    %cst_16 = arith.constant 7.812500e-03 : f32
    %25 = vector.broadcast %cst_16 : f32 to vector<1x32x1xf32>
    %26 = arith.mulf %24, %25 : vector<1x32x1xf32>
    %27 = arith.mulf %26, %1 : vector<1x32x1xf32>
    %28 = arith.addf %27, %3 : vector<1x32x1xf32>
    %29 = arith.negf %28 : vector<1x32x1xf32>
    %30 = math.exp %29 : vector<1x32x1xf32>
    %cst_17 = arith.constant 1.000000e+00 : f32
    %31 = vector.broadcast %cst_17 : f32 to vector<1x32x1xf32>
    %32 = arith.addf %31, %30 : vector<1x32x1xf32>
    %33 = arith.divf %31, %32 : vector<1x32x1xf32>
    %cst_18 = arith.constant 0.000000e+00 : f32
    %34 = vector.broadcast %cst_18 : f32 to vector<1x32x1xf32>
    %cst_19 = arith.constant 0.000000e+00 : f32
    %35 = vector.broadcast %cst_19 : f32 to vector<1x32x1xf32>
    %c0_20 = arith.constant 0 : index
    %c2 = arith.constant 2 : index
    %c0_21 = arith.constant 0 : index
    %36 = tpu.strided_load %arg2[%c0_20, %c2, %c0_21] {strides = array<i32: 1, 4, 1>} : memref<1x128x128xf32, #tpu.memory_space<vmem>>, vector<1x32x128xf32>
    %cst_22 = arith.constant dense<0.000000e+00> : vector<1x32xf32>
    %37 = vector.multi_reduction <add>, %36, %cst_22 [2] : vector<1x32x128xf32> to vector<1x32xf32>
    %38 = vector.shape_cast %37 : vector<1x32xf32> to vector<1x32x1xf32>
    %39 = arith.addf %34, %38 : vector<1x32x1xf32>
    %40 = arith.mulf %36, %36 : vector<1x32x128xf32>
    %cst_23 = arith.constant dense<0.000000e+00> : vector<1x32xf32>
    %41 = vector.multi_reduction <add>, %40, %cst_23 [2] : vector<1x32x128xf32> to vector<1x32xf32>
    %42 = vector.shape_cast %41 : vector<1x32xf32> to vector<1x32x1xf32>
    %43 = arith.addf %35, %42 : vector<1x32x1xf32>
    %c0_24 = arith.constant 0 : index
    %c3 = arith.constant 3 : index
    %c0_25 = arith.constant 0 : index
    %44 = tpu.strided_load %arg2[%c0_24, %c3, %c0_25] {strides = array<i32: 1, 4, 1>} : memref<1x128x128xf32, #tpu.memory_space<vmem>>, vector<1x32x128xf32>
    %cst_26 = arith.constant dense<0.000000e+00> : vector<1x32xf32>
    %45 = vector.multi_reduction <add>, %44, %cst_26 [2] : vector<1x32x128xf32> to vector<1x32xf32>
    %46 = vector.shape_cast %45 : vector<1x32xf32> to vector<1x32x1xf32>
    %47 = arith.addf %39, %46 : vector<1x32x1xf32>
    %48 = arith.mulf %44, %44 : vector<1x32x128xf32>
    %cst_27 = arith.constant dense<0.000000e+00> : vector<1x32xf32>
    %49 = vector.multi_reduction <add>, %48, %cst_27 [2] : vector<1x32x128xf32> to vector<1x32xf32>
    %50 = vector.shape_cast %49 : vector<1x32xf32> to vector<1x32x1xf32>
    %51 = arith.addf %43, %50 : vector<1x32x1xf32>
    %cst_28 = arith.constant 3.906250e-03 : f32
    %52 = vector.broadcast %cst_28 : f32 to vector<1x32x1xf32>
    %53 = arith.mulf %47, %52 : vector<1x32x1xf32>
    %cst_29 = arith.constant 3.906250e-03 : f32
    %54 = vector.broadcast %cst_29 : f32 to vector<1x32x1xf32>
    %55 = arith.mulf %51, %54 : vector<1x32x1xf32>
    %56 = arith.mulf %53, %53 : vector<1x32x1xf32>
    %57 = arith.subf %55, %56 : vector<1x32x1xf32>
    %cst_30 = arith.constant 0.000000e+00 : f32
    %58 = vector.broadcast %cst_30 : f32 to vector<1x32x1xf32>
    %59 = arith.maximumf %57, %58 : vector<1x32x1xf32>
    %cst_31 = arith.constant 9.99999974E-6 : f32
    %60 = vector.broadcast %cst_31 : f32 to vector<1x32x1xf32>
    %61 = arith.addf %59, %60 : vector<1x32x1xf32>
    %62 = math.rsqrt %61 : vector<1x32x1xf32>
    %c0_32 = arith.constant 0 : index
    %c0_33 = arith.constant 0 : index
    %63 = vector.load %arg7[%c0_32, %c0_33] : memref<32x2xf32, #tpu.memory_space<vmem>>, vector<32x2xf32>
    %cst_34 = arith.constant dense<0.000000e+00> : vector<32xf32>
    %64 = vector.multi_reduction <add>, %63, %cst_34 [1] : vector<32x2xf32> to vector<32xf32>
    %65 = vector.shape_cast %64 : vector<32xf32> to vector<32x1xf32>
    %66 = vector.shape_cast %65 : vector<32x1xf32> to vector<1x32x1xf32>
    %c0_35 = arith.constant 0 : index
    %c0_36 = arith.constant 0 : index
    %67 = vector.load %arg8[%c0_35, %c0_36] : memref<32x2xf32, #tpu.memory_space<vmem>>, vector<32x2xf32>
    %cst_37 = arith.constant dense<0.000000e+00> : vector<32xf32>
    %68 = vector.multi_reduction <add>, %67, %cst_37 [1] : vector<32x2xf32> to vector<32xf32>
    %69 = vector.shape_cast %68 : vector<32xf32> to vector<32x1xf32>
    %70 = vector.shape_cast %69 : vector<32x1xf32> to vector<1x32x1xf32>
    %71 = arith.mulf %62, %9 : vector<1x32x1xf32>
    %c0_38 = arith.constant 0 : index
    %c0_39 = arith.constant 0 : index
    %72 = vector.load %arg7[%c0_38, %c0_39] : memref<32x2xf32, #tpu.memory_space<vmem>>, vector<32x1xf32>
    %73 = vector.shape_cast %72 : vector<32x1xf32> to vector<1x32x1xf32>
    %74 = arith.mulf %71, %73 : vector<1x32x1xf32>
    %75 = arith.mulf %62, %9 : vector<1x32x1xf32>
    %c0_40 = arith.constant 0 : index
    %c1_41 = arith.constant 1 : index
    %76 = vector.load %arg7[%c0_40, %c1_41] : memref<32x2xf32, #tpu.memory_space<vmem>>, vector<32x1xf32>
    %77 = vector.shape_cast %76 : vector<32x1xf32> to vector<1x32x1xf32>
    %78 = arith.mulf %75, %77 : vector<1x32x1xf32>
    %79 = arith.mulf %62, %53 : vector<1x32x1xf32>
    %80 = arith.mulf %79, %66 : vector<1x32x1xf32>
    %81 = arith.subf %70, %80 : vector<1x32x1xf32>
    %82 = arith.mulf %81, %9 : vector<1x32x1xf32>
    %83 = arith.addf %82, %5 : vector<1x32x1xf32>
    %c0_42 = arith.constant 0 : index
    %c0_43 = arith.constant 0 : index
    %c0_44 = arith.constant 0 : index
    %84 = tpu.strided_load %arg2[%c0_42, %c0_43, %c0_44] {strides = array<i32: 1, 4, 1>} : memref<1x128x128xf32, #tpu.memory_space<vmem>>, vector<1x32x128xf32>
    %85 = vector.broadcast %21 : vector<1x32x1xf32> to vector<1x32x128xf32>
    %86 = arith.mulf %84, %85 : vector<1x32x128xf32>
    %c0_45 = arith.constant 0 : index
    %c0_46 = arith.constant 0 : index
    %c0_47 = arith.constant 0 : index
    %c0_48 = arith.constant 0 : index
    %87 = vector.load %arg9[%c0_45, %c0_46, %c0_47, %c0_48] : memref<1x4x32x128xf32, #tpu.memory_space<vmem>>, vector<1x1x32x128xf32>
    %88 = vector.shape_cast %87 : vector<1x1x32x128xf32> to vector<1x32x128xf32>
    %89 = vector.shape_cast %86 : vector<1x32x128xf32> to vector<1x1x32x128xf32>
    tpu.vector_store %arg9[%c0_45, %c0_46, %c0_47, %c0_48], %89 {strides = array<i32>} : memref<1x4x32x128xf32, #tpu.memory_space<vmem>>, vector<1x1x32x128xf32>,
    %c0_49 = arith.constant 0 : index
    %c1_50 = arith.constant 1 : index
    %c0_51 = arith.constant 0 : index
    %90 = tpu.strided_load %arg2[%c0_49, %c1_50, %c0_51] {strides = array<i32: 1, 4, 1>} : memref<1x128x128xf32, #tpu.memory_space<vmem>>, vector<1x32x128xf32>
    %91 = vector.broadcast %33 : vector<1x32x1xf32> to vector<1x32x128xf32>
    %92 = arith.mulf %90, %91 : vector<1x32x128xf32>
    %c0_52 = arith.constant 0 : index
    %c1_53 = arith.constant 1 : index
    %c0_54 = arith.constant 0 : index
    %c0_55 = arith.constant 0 : index
    %93 = vector.load %arg9[%c0_52, %c1_53, %c0_54, %c0_55] : memref<1x4x32x128xf32, #tpu.memory_space<vmem>>, vector<1x1x32x128xf32>
    %94 = vector.shape_cast %93 : vector<1x1x32x128xf32> to vector<1x32x128xf32>
    %95 = vector.shape_cast %92 : vector<1x32x128xf32> to vector<1x1x32x128xf32>
    tpu.vector_store %arg9[%c0_52, %c1_53, %c0_54, %c0_55], %95 {strides = array<i32>} : memref<1x4x32x128xf32, #tpu.memory_space<vmem>>, vector<1x1x32x128xf32>,
    %c0_56 = arith.constant 0 : index
    %c2_57 = arith.constant 2 : index
    %c0_58 = arith.constant 0 : index
    %96 = tpu.strided_load %arg2[%c0_56, %c2_57, %c0_58] {strides = array<i32: 1, 4, 1>} : memref<1x128x128xf32, #tpu.memory_space<vmem>>, vector<1x32x128xf32>
    %97 = vector.broadcast %74 : vector<1x32x1xf32> to vector<1x32x128xf32>
    %98 = arith.mulf %96, %97 : vector<1x32x128xf32>
    %c0_59 = arith.constant 0 : index
    %c3_60 = arith.constant 3 : index
    %c0_61 = arith.constant 0 : index
    %99 = tpu.strided_load %arg2[%c0_59, %c3_60, %c0_61] {strides = array<i32: 1, 4, 1>} : memref<1x128x128xf32, #tpu.memory_space<vmem>>, vector<1x32x128xf32>
    %100 = vector.broadcast %78 : vector<1x32x1xf32> to vector<1x32x128xf32>
    %101 = arith.mulf %99, %100 : vector<1x32x128xf32>
    %102 = arith.addf %98, %101 : vector<1x32x128xf32>
    %103 = vector.broadcast %83 : vector<1x32x1xf32> to vector<1x32x128xf32>
    %104 = arith.addf %102, %103 : vector<1x32x128xf32>
    %105 = arith.negf %104 : vector<1x32x128xf32>
    %106 = math.exp %105 : vector<1x32x128xf32>
    %cst_62 = arith.constant 1.000000e+00 : f32
    %107 = vector.broadcast %cst_62 : f32 to vector<1x32x128xf32>
    %108 = arith.addf %107, %106 : vector<1x32x128xf32>
    %109 = arith.divf %107, %108 : vector<1x32x128xf32>
    %c0_63 = arith.constant 0 : index
    %c2_64 = arith.constant 2 : index
    %c0_65 = arith.constant 0 : index
    %110 = tpu.strided_load %arg2[%c0_63, %c2_64, %c0_65] {strides = array<i32: 1, 4, 1>} : memref<1x128x128xf32, #tpu.memory_space<vmem>>, vector<1x32x128xf32>
    %111 = arith.mulf %110, %109 : vector<1x32x128xf32>
    %c0_66 = arith.constant 0 : index
    %c2_67 = arith.constant 2 : index
    %c0_68 = arith.constant 0 : index
    %c0_69 = arith.constant 0 : index
    %112 = vector.load %arg9[%c0_66, %c2_67, %c0_68, %c0_69] : memref<1x4x32x128xf32, #tpu.memory_space<vmem>>, vector<1x1x32x128xf32>
    %113 = vector.shape_cast %112 : vector<1x1x32x128xf32> to vector<1x32x128xf32>
    %114 = vector.shape_cast %111 : vector<1x32x128xf32> to vector<1x1x32x128xf32>
    tpu.vector_store %arg9[%c0_66, %c2_67, %c0_68, %c0_69], %114 {strides = array<i32>} : memref<1x4x32x128xf32, #tpu.memory_space<vmem>>, vector<1x1x32x128xf32>,
    %c0_70 = arith.constant 0 : index
    %c3_71 = arith.constant 3 : index
    %c0_72 = arith.constant 0 : index
    %115 = tpu.strided_load %arg2[%c0_70, %c3_71, %c0_72] {strides = array<i32: 1, 4, 1>} : memref<1x128x128xf32, #tpu.memory_space<vmem>>, vector<1x32x128xf32>
    %116 = arith.mulf %115, %109 : vector<1x32x128xf32>
    %c0_73 = arith.constant 0 : index
    %c3_74 = arith.constant 3 : index
    %c0_75 = arith.constant 0 : index
    %c0_76 = arith.constant 0 : index
    %117 = vector.load %arg9[%c0_73, %c3_74, %c0_75, %c0_76] : memref<1x4x32x128xf32, #tpu.memory_space<vmem>>, vector<1x1x32x128xf32>
    %118 = vector.shape_cast %117 : vector<1x1x32x128xf32> to vector<1x32x128xf32>
    %119 = vector.shape_cast %116 : vector<1x32x128xf32> to vector<1x1x32x128xf32>
    tpu.vector_store %arg9[%c0_73, %c3_74, %c0_75, %c0_76], %119 {strides = array<i32>} : memref<1x4x32x128xf32, #tpu.memory_space<vmem>>, vector<1x1x32x128xf32>,
    return
  }
  func.func @transform_0(%arg0: i32, %arg1: i32) -> (i32, i32, i32) {
    %c0_i32 = arith.constant 0 : i32
    %c0_i32_0 = arith.constant 0 : i32
    return %arg0, %arg1, %c0_i32 : i32, i32, i32
  }
  func.func @transform_1(%arg0: i32, %arg1: i32) -> (i32, i32) {
    %c0_i32 = arith.constant 0 : i32
    %c0_i32_0 = arith.constant 0 : i32
    return %arg1, %c0_i32 : i32, i32
  }
  func.func @transform_2(%arg0: i32, %arg1: i32) -> (i32, i32) {
    %c0_i32 = arith.constant 0 : i32
    %c0_i32_0 = arith.constant 0 : i32
    return %arg1, %c0_i32 : i32, i32
  }
  func.func @transform_3(%arg0: i32, %arg1: i32) -> (i32, i32) {
    %c0_i32 = arith.constant 0 : i32
    %c0_i32_0 = arith.constant 0 : i32
    return %arg1, %c0_i32 : i32, i32
  }
  func.func @transform_4(%arg0: i32, %arg1: i32) -> (i32, i32) {
    %c0_i32 = arith.constant 0 : i32
    %c0_i32_0 = arith.constant 0 : i32
    return %arg1, %c0_i32 : i32, i32
  }
  func.func @transform_5(%arg0: i32, %arg1: i32) -> (i32, i32) {
    %c0_i32 = arith.constant 0 : i32
    %c0_i32_0 = arith.constant 0 : i32
    return %arg1, %c0_i32 : i32, i32
  }
  func.func @transform_6(%arg0: i32, %arg1: i32) -> (i32, i32) {
    %c0_i32 = arith.constant 0 : i32
    %c0_i32_0 = arith.constant 0 : i32
    return %arg1, %c0_i32 : i32, i32
  }
  func.func @transform_7(%arg0: i32, %arg1: i32) -> (i32, i32, i32, i32) {
    %c0_i32 = arith.constant 0 : i32
    %c0_i32_0 = arith.constant 0 : i32
    %c0_i32_1 = arith.constant 0 : i32
    return %arg0, %c0_i32, %arg1, %c0_i32_0 : i32, i32, i32, i32
  }
}

</mosaic_0001>

<llo_original>
// kernel: tpu_custom_call.1
$region0: #{tpu_custom_call.1}
  #allocation0 [shape = 'u32[]', space=smem, size = 0x4, offset = 0x4, fixed_abs, tag = 'smem constant byte address 0x4 - core index']
  #allocation1 [shape = 'u32[144,128]{1,0:T(1,128)}', space=vmem, size = 0x12000, scoped, tag = 'internal scratch']
  %s0 = inlined_call_operand.hbm [shape: f32[2,128,128], index: 0, kind: input, shape index: {}]
  %s1 = inlined_call_operand.vmem [shape: f32[32,1], index: 1, kind: input, shape index: {}]
  %s2 = inlined_call_operand.vmem [shape: f32[32,1], index: 2, kind: input, shape index: {}]
  %s3 = inlined_call_operand.vmem [shape: f32[32,1], index: 3, kind: input, shape index: {}]
  %s4 = inlined_call_operand.vmem [shape: f32[32,1], index: 4, kind: input, shape index: {}]
  %s5 = inlined_call_operand.vmem [shape: f32[32,2], index: 5, kind: input, shape index: {}]
  %s6 = inlined_call_operand.vmem [shape: f32[32,2], index: 6, kind: input, shape index: {}]
  %s7 = inlined_call_operand.hbm [shape: f32[2,4,32,128], index: 7, kind: output, shape index: {}]
  %s8 = sld [smem:[#allocation0]]
  $region65: #{tpu_custom_call.1} parent=0
    _
  %s10 = ssub.s32 1, %s8
  %s11 = scalar_select 0, %s10, %s8
  $region1: #{tpu_custom_call.1} parent=0
    #allocation2 [shape = 'u8[131072]{0}', space=vmem, size = 0x20000, scoped, tag = 'input window, operand 0']
    #allocation3 [shape = 's32[2]{0}', space=sflag, size = 0x8, scoped, tag = 'scoped memory for tpu_custom_call.1']
    #allocation4 [shape = 's32[2]{0}', space=sflag, size = 0x8, scoped, tag = 'scoped memory for tpu_custom_call.1']
    #allocation5 [shape = 'u8[131072]{0}', space=vmem, size = 0x20000, scoped, tag = 'output window, operand 0']
    %12 = vsyncpa [#allocation3], 0
    %s13 = scalar_lea.sflag [#allocation3], 1
    %14 = vsyncpa %s13, 0
    %15 = vsyncpa [#allocation4], 0
    %s16 = scalar_lea.sflag [#allocation4], 1
    %17 = vsyncpa %s16, 0
    loop: start=0, step=1, limit=4
    $region2: #{tpu_custom_call.1} parent=1 // loop_pre_header
      _
    $region3: #{tpu_custom_call.1} parent=1 // loop_header
      %s19 = sphi 0, %s23
      %p20 = scmp.ge.s32.totalorder %s19, 4
      %s26 = sphi 0, %s38
      %s27 = sphi 0, %s34
      %s28 = sphi 0, %s26
      %s29 = sphi 0, %s27
      %s30 = sphi 0, %s28
      %s31 = sphi 0, %s29
      %s43 = sphi 0, %s45
      %s46 = sphi 0, %s43
      %s47 = sphi 0, %s46
      %s63 = sphi 0, %s47
      %s69 = sphi 0, %s71
      %s72 = sphi 0, %s69
      %s73 = sphi 0, %s72
      %s89 = sphi 0, %s73
      %s95 = sphi 0, %s97
      %s98 = sphi 0, %s95
      %s99 = sphi 0, %s98
      %s115 = sphi 0, %s99
      %s121 = sphi 0, %s123
      %s124 = sphi 0, %s121
      %s125 = sphi 0, %s124
      %s141 = sphi 0, %s125
      %s147 = sphi 0, %s149
      %s150 = sphi 0, %s147
      %s151 = sphi 0, %s150
      %s167 = sphi 0, %s151
      %s173 = sphi 0, %s175
      %s176 = sphi 0, %s173
      %s177 = sphi 0, %s176
      %s193 = sphi 0, %s177
      %s199 = sphi 0, %s201
      %s202 = sphi 0, %s199
      %s203 = sphi 0, %s202
      %s219 = sphi 0, %s203
      %s227 = sphi 0, %s229
      %s230 = sphi 0, %s227
      %s231 = sphi 0, %s230
      %s247 = sphi 0, %s231
    $region4: #{tpu_custom_call.1} parent=1 // loop_header_branch
      %22 = sbr.rel (%p20) target = $region8
    $region5: #{tpu_custom_call.1} parent=1 // loop_body
      %s24 = ssub.s32 %s19, 1
      %s25 = ssub.s32 %s19, 2
      %s32 = sadd.s32 1, %s27
      %p33 = scmp.ge.s32.totalorder %s32, 1
      %s34 = scalar_select %p33, 0, %s32
      %s35 = sadd.s32 1, %s26
      %s36 = scalar_select %p33, %s35, %s26
      %p37 = scmp.ge.s32.totalorder %s36, 2
      %s38 = scalar_select %p37, 0, %s36
      %s39 = ssub.s32 %s26, %s38
      %s40 = ssub.s32 %s27, %s34
      %s41 = sor.u32 %s39, %s40
      %p42 = scmp.eq.s32.totalorder %s41, 0
      %s44 = sadd.s32 %s43, 1
      %s45 = scalar_select %p42, %s43, %s44
      %p48 = pneg %p42
      %p49 = scmp.eq.s32.totalorder %s19, 1
      %p50 = por %p48, %p49
      %p51 = scmp.ne.s32.totalorder %s43, %s46
      %p52 = scmp.eq.s32.totalorder %s19, 0
      %p53 = por %p51, %p52
      %p54 = scmp.ne.s32.totalorder %s43, %s46
      %p55 = scmp.eq.s32.totalorder %s24, 1
      %p56 = por %p54, %p55
      %p57 = scmp.ne.s32.totalorder %s46, %s47
      %p58 = scmp.eq.s32.totalorder %s24, 0
      %p59 = por %p57, %p58
      %p60 = scmp.ne.s32.totalorder %s46, %s47
      %p61 = scmp.eq.s32.totalorder %s25, 1
      %p62 = por %p60, %p61
      %p64 = scmp.ne.s32.totalorder %s47, %s63
      %p65 = scmp.eq.s32.totalorder %s25, 0
      %p66 = por %p64, %p65
      %s67 = ssub.s32 %s27, %s34
      %p68 = scmp.eq.s32.totalorder %s67, 0
      %s70 = sadd.s32 %s69, 1
      %s71 = scalar_select %p68, %s69, %s70
      %p74 = pneg %p68
      %p75 = scmp.eq.s32.totalorder %s19, 1
      %p76 = por %p74, %p75
      %p77 = scmp.ne.s32.totalorder %s69, %s72
      %p78 = scmp.eq.s32.totalorder %s19, 0
      %p79 = por %p77, %p78
      %p80 = scmp.ne.s32.totalorder %s69, %s72
      %p81 = scmp.eq.s32.totalorder %s24, 1
      %p82 = por %p80, %p81
      %p83 = scmp.ne.s32.totalorder %s72, %s73
      %p84 = scmp.eq.s32.totalorder %s24, 0
      %p85 = por %p83, %p84
      %p86 = scmp.ne.s32.totalorder %s72, %s73
      %p87 = scmp.eq.s32.totalorder %s25, 1
      %p88 = por %p86, %p87
      %p90 = scmp.ne.s32.totalorder %s73, %s89
      %p91 = scmp.eq.s32.totalorder %s25, 0
      %p92 = por %p90, %p91
      %s93 = ssub.s32 %s27, %s34
      %p94 = scmp.eq.s32.totalorder %s93, 0
      %s96 = sadd.s32 %s95, 1
      %s97 = scalar_select %p94, %s95, %s96
      %p100 = pneg %p94
      %p101 = scmp.eq.s32.totalorder %s19, 1
      %p102 = por %p100, %p101
      %p103 = scmp.ne.s32.totalorder %s95, %s98
      %p104 = scmp.eq.s32.totalorder %s19, 0
      %p105 = por %p103, %p104
      %p106 = scmp.ne.s32.totalorder %s95, %s98
      %p107 = scmp.eq.s32.totalorder %s24, 1
      %p108 = por %p106, %p107
      %p109 = scmp.ne.s32.totalorder %s98, %s99
      %p110 = scmp.eq.s32.totalorder %s24, 0
      %p111 = por %p109, %p110
      %p112 = scmp.ne.s32.totalorder %s98, %s99
      %p113 = scmp.eq.s32.totalorder %s25, 1
      %p114 = por %p112, %p113
      %p116 = scmp.ne.s32.totalorder %s99, %s115
      %p117 = scmp.eq.s32.totalorder %s25, 0
      %p118 = por %p116, %p117
      %s119 = ssub.s32 %s27, %s34
      %p120 = scmp.eq.s32.totalorder %s119, 0
      %s122 = sadd.s32 %s121, 1
      %s123 = scalar_select %p120, %s121, %s122
      %p126 = pneg %p120
      %p127 = scmp.eq.s32.totalorder %s19, 1
      %p128 = por %p126, %p127
      %p129 = scmp.ne.s32.totalorder %s121, %s124
      %p130 = scmp.eq.s32.totalorder %s19, 0
      %p131 = por %p129, %p130
      %p132 = scmp.ne.s32.totalorder %s121, %s124
      %p133 = scmp.eq.s32.totalorder %s24, 1
      %p134 = por %p132, %p133
      %p135 = scmp.ne.s32.totalorder %s124, %s125
      %p136 = scmp.eq.s32.totalorder %s24, 0
      %p137 = por %p135, %p136
      %p138 = scmp.ne.s32.totalorder %s124, %s125
      %p139 = scmp.eq.s32.totalorder %s25, 1
      %p140 = por %p138, %p139
      %p142 = scmp.ne.s32.totalorder %s125, %s141
      %p143 = scmp.eq.s32.totalorder %s25, 0
      %p144 = por %p142, %p143
      %s145 = ssub.s32 %s27, %s34
      %p146 = scmp.eq.s32.totalorder %s145, 0
      %s148 = sadd.s32 %s147, 1
      %s149 = scalar_select %p146, %s147, %s148
      %p152 = pneg %p146
      %p153 = scmp.eq.s32.totalorder %s19, 1
      %p154 = por %p152, %p153
      %p155 = scmp.ne.s32.totalorder %s147, %s150
      %p156 = scmp.eq.s32.totalorder %s19, 0
      %p157 = por %p155, %p156
      %p158 = scmp.ne.s32.totalorder %s147, %s150
      %p159 = scmp.eq.s32.totalorder %s24, 1
      %p160 = por %p158, %p159
      %p161 = scmp.ne.s32.totalorder %s150, %s151
      %p162 = scmp.eq.s32.totalorder %s24, 0
      %p163 = por %p161, %p162
      %p164 = scmp.ne.s32.totalorder %s150, %s151
      %p165 = scmp.eq.s32.totalorder %s25, 1
      %p166 = por %p164, %p165
      %p168 = scmp.ne.s32.totalorder %s151, %s167
      %p169 = scmp.eq.s32.totalorder %s25, 0
      %p170 = por %p168, %p169
      %s171 = ssub.s32 %s27, %s34
      %p172 = scmp.eq.s32.totalorder %s171, 0
      %s174 = sadd.s32 %s173, 1
      %s175 = scalar_select %p172, %s173, %s174
      %p178 = pneg %p172
      %p179 = scmp.eq.s32.totalorder %s19, 1
      %p180 = por %p178, %p179
      %p181 = scmp.ne.s32.totalorder %s173, %s176
      %p182 = scmp.eq.s32.totalorder %s19, 0
      %p183 = por %p181, %p182
      %p184 = scmp.ne.s32.totalorder %s173, %s176
      %p185 = scmp.eq.s32.totalorder %s24, 1
      %p186 = por %p184, %p185
      %p187 = scmp.ne.s32.totalorder %s176, %s177
      %p188 = scmp.eq.s32.totalorder %s24, 0
      %p189 = por %p187, %p188
      %p190 = scmp.ne.s32.totalorder %s176, %s177
      %p191 = scmp.eq.s32.totalorder %s25, 1
      %p192 = por %p190, %p191
      %p194 = scmp.ne.s32.totalorder %s177, %s193
      %p195 = scmp.eq.s32.totalorder %s25, 0
      %p196 = por %p194, %p195
      %s197 = ssub.s32 %s27, %s34
      %p198 = scmp.eq.s32.totalorder %s197, 0
      %s200 = sadd.s32 %s199, 1
      %s201 = scalar_select %p198, %s199, %s200
      %p204 = pneg %p198
      %p205 = scmp.eq.s32.totalorder %s19, 1
      %p206 = por %p204, %p205
      %p207 = scmp.ne.s32.totalorder %s199, %s202
      %p208 = scmp.eq.s32.totalorder %s19, 0
      %p209 = por %p207, %p208
      %p210 = scmp.ne.s32.totalorder %s199, %s202
      %p211 = scmp.eq.s32.totalorder %s24, 1
      %p212 = por %p210, %p211
      %p213 = scmp.ne.s32.totalorder %s202, %s203
      %p214 = scmp.eq.s32.totalorder %s24, 0
      %p215 = por %p213, %p214
      %p216 = scmp.ne.s32.totalorder %s202, %s203
      %p217 = scmp.eq.s32.totalorder %s25, 1
      %p218 = por %p216, %p217
      %p220 = scmp.ne.s32.totalorder %s203, %s219
      %p221 = scmp.eq.s32.totalorder %s25, 0
      %p222 = por %p220, %p221
      %s223 = ssub.s32 %s26, %s38
      %s224 = ssub.s32 %s27, %s34
      %s225 = sor.u32 %s223, %s224
      %p226 = scmp.eq.s32.totalorder %s225, 0
      %s228 = sadd.s32 %s227, 1
      %s229 = scalar_select %p226, %s227, %s228
      %p232 = pneg %p226
      %p233 = scmp.eq.s32.totalorder %s19, 1
      %p234 = por %p232, %p233
      %p235 = scmp.ne.s32.totalorder %s227, %s230
      %p236 = scmp.eq.s32.totalorder %s19, 0
      %p237 = por %p235, %p236
      %p238 = scmp.ne.s32.totalorder %s227, %s230
      %p239 = scmp.eq.s32.totalorder %s24, 1
      %p240 = por %p238, %p239
      %p241 = scmp.ne.s32.totalorder %s230, %s231
      %p242 = scmp.eq.s32.totalorder %s24, 0
      %p243 = por %p241, %p242
      %p244 = scmp.ne.s32.totalorder %s230, %s231
      %p245 = scmp.eq.s32.totalorder %s25, 1
      %p246 = por %p244, %p245
      %p248 = scmp.ne.s32.totalorder %s231, %s247
      %p249 = scmp.eq.s32.totalorder %s25, 0
      %p250 = por %p248, %p249
      %p251 = scmp.le.s32.totalorder 1, %s19
      %p252 = scmp.lt.s32.totalorder %s19, 3
      %p253 = pnand %p251, %p252
      %p254 = pneg %p253
      // Predicated region
      $region9: #{tpu_custom_call.1} parent=5 // pred_check
        _
      $region10: #{tpu_custom_call.1} parent=5 // pred_check_branch
        %256 = sbr.rel (%p253) target = $region12
      $region11: #{tpu_custom_call.1} parent=5 // pred_region
        %s257 = ssub.s32 %s19, 1
        // Predicated region
        $region13: #{tpu_custom_call.1} parent=11 // pred_check
          %p258 = pneg %p85
        $region14: #{tpu_custom_call.1} parent=11 // pred_check_branch
          %260 = sbr.rel (%p258) target = $region16
        $region15: #{tpu_custom_call.1} parent=11 // pred_region
          %s261 = smul.u32 4, %s29
          %p262 = scmp.lt.s32.totalorder %s261, 3
          %s263 = scalar_select %p262, %s261, 3
          %s264 = smul.addr %s263, 8
          %s265 = scalar_lea.vmem %s1, %s264
          %s266 = smul.u32 4, %s29
        $region16: #{tpu_custom_call.1} parent=11 // pred_fallthru
          _
        // Predicated region
        $region17: #{tpu_custom_call.1} parent=11 // pred_check
          %p267 = pneg %p111
        $region18: #{tpu_custom_call.1} parent=11 // pred_check_branch
          %269 = sbr.rel (%p267) target = $region20
        $region19: #{tpu_custom_call.1} parent=11 // pred_region
          %s270 = smul.u32 4, %s29
          %p271 = scmp.lt.s32.totalorder %s270, 3
          %s272 = scalar_select %p271, %s270, 3
          %s273 = smul.addr %s272, 8
          %s274 = scalar_lea.vmem %s2, %s273
          %s275 = smul.u32 4, %s29
        $region20: #{tpu_custom_call.1} parent=11 // pred_fallthru
          _
        // Predicated region
        $region21: #{tpu_custom_call.1} parent=11 // pred_check
          %p276 = pneg %p137
        $region22: #{tpu_custom_call.1} parent=11 // pred_check_branch
          %278 = sbr.rel (%p276) target = $region24
        $region23: #{tpu_custom_call.1} parent=11 // pred_region
          %s279 = smul.u32 4, %s29
          %p280 = scmp.lt.s32.totalorder %s279, 3
          %s281 = scalar_select %p280, %s279, 3
          %s282 = smul.addr %s281, 8
          %s283 = scalar_lea.vmem %s3, %s282
          %s284 = smul.u32 4, %s29
        $region24: #{tpu_custom_call.1} parent=11 // pred_fallthru
          _
        // Predicated region
        $region25: #{tpu_custom_call.1} parent=11 // pred_check
          %p285 = pneg %p163
        $region26: #{tpu_custom_call.1} parent=11 // pred_check_branch
          %287 = sbr.rel (%p285) target = $region28
        $region27: #{tpu_custom_call.1} parent=11 // pred_region
          %s288 = smul.u32 4, %s29
          %p289 = scmp.lt.s32.totalorder %s288, 3
          %s290 = scalar_select %p289, %s288, 3
          %s291 = smul.addr %s290, 8
          %s292 = scalar_lea.vmem %s4, %s291
          %s293 = smul.u32 4, %s29
        $region28: #{tpu_custom_call.1} parent=11 // pred_fallthru
          _
        // Predicated region
        $region29: #{tpu_custom_call.1} parent=11 // pred_check
          %p294 = pneg %p189
        $region30: #{tpu_custom_call.1} parent=11 // pred_check_branch
          %296 = sbr.rel (%p294) target = $region32
        $region31: #{tpu_custom_call.1} parent=11 // pred_region
          %s297 = smul.u32 4, %s29
          %p298 = scmp.lt.s32.totalorder %s297, 3
          %s299 = scalar_select %p298, %s297, 3
          %s300 = smul.addr %s299, 8
          %s301 = scalar_lea.vmem %s5, %s300
          %s302 = smul.u32 4, %s29
        $region32: #{tpu_custom_call.1} parent=11 // pred_fallthru
          _
        // Predicated region
        $region33: #{tpu_custom_call.1} parent=11 // pred_check
          %p303 = pneg %p215
        $region34: #{tpu_custom_call.1} parent=11 // pred_check_branch
          %305 = sbr.rel (%p303) target = $region36
        $region35: #{tpu_custom_call.1} parent=11 // pred_region
          %s306 = smul.u32 4, %s29
          %p307 = scmp.lt.s32.totalorder %s306, 3
          %s308 = scalar_select %p307, %s306, 3
          %s309 = smul.addr %s308, 8
          %s310 = scalar_lea.vmem %s6, %s309
          %s311 = smul.u32 4, %s29
        $region36: #{tpu_custom_call.1} parent=11 // pred_fallthru
          _
      $region12: #{tpu_custom_call.1} parent=5 // pred_fallthru
        _
      %p312 = scmp.lt.s32.totalorder %s19, 2
      // Predicated region
      $region37: #{tpu_custom_call.1} parent=5 // pred_check
        %p313 = pneg %p312
      $region38: #{tpu_custom_call.1} parent=5 // pred_check_branch
        %315 = sbr.rel (%p313) target = $region40
      $region39: #{tpu_custom_call.1} parent=5 // pred_region
        // Predicated region
        $region41: #{tpu_custom_call.1} parent=39 // pred_check
          %p316 = pneg %p53
        $region42: #{tpu_custom_call.1} parent=39 // pred_check_branch
          %318 = sbr.rel (%p316) target = $region44
        $region43: #{tpu_custom_call.1} parent=39 // pred_region
          %s319 = sand.u32 %s43, 1
          %s320 = scalar_lea.sflag [#allocation3], %s319
          %s321 = sand.u32 %s43, 1
          %s322 = smul.addr %s321, 128
          %s323 = scalar_lea.vmem [#allocation2], %s322
          %s324 = smul.u32 16, %s27
          %s326 = ssub.s32 2048, 2048
          %327 = vsyncadd %s320, %s326
          %s328 = smul.addr %s26, 16
          %s329 = sadd.s32 %s324, %s328
          %s330 = smul.addr %s329, 128
          %s331 = scalar_lea.hbm %s0, %s330
          %s332 = sshll.u32 %s323, 4
          %s333 = int_to_ptr.vmem [resolvable:$true] %s332
          %338 = dma.hbm_to_vmem [thread:$0]  %s331, 2048, %s333, %s320, 128, 128, 8
        $region44: #{tpu_custom_call.1} parent=39 // pred_fallthru
          _
      $region40: #{tpu_custom_call.1} parent=5 // pred_fallthru
        _
      %p339 = scmp.le.s32.totalorder 1, %s19
      %p340 = scmp.lt.s32.totalorder %s19, 3
      %p341 = pnand %p339, %p340
      %p342 = pneg %p341
      // Predicated region
      $region45: #{tpu_custom_call.1} parent=5 // pred_check
        _
      $region46: #{tpu_custom_call.1} parent=5 // pred_check_branch
        %344 = sbr.rel (%p341) target = $region48
      $region47: #{tpu_custom_call.1} parent=5 // pred_region
        %s345 = ssub.s32 %s19, 1
        %s346 = sand.u32 %s46, 1
        %s347 = scalar_lea.sflag [#allocation3], %s346
        %s348 = sand.u32 %s46, 1
        %s349 = smul.addr %s348, 128
        %s350 = scalar_lea.vmem [#allocation2], %s349
        // Predicated region
        $region49: #{tpu_custom_call.1} parent=47 // pred_check
          %p351 = pneg %p59
        $region50: #{tpu_custom_call.1} parent=47 // pred_check_branch
          %353 = sbr.rel (%p351) target = $region52
        $region51: #{tpu_custom_call.1} parent=47 // pred_region
          %354 = dma.done %s347, 2048
        $region52: #{tpu_custom_call.1} parent=47 // pred_fallthru
          _
        %s355 = sand.u32 %s46, 1
        %s356 = scalar_lea.sflag [#allocation3], %s355
        %s357 = sand.u32 %s46, 1
        %s358 = smul.addr %s357, 128
        %s359 = scalar_lea.vmem [#allocation2], %s358
        %p360 = pneg %p59
        %p361 = pneg %p56
        %s362 = smul.u32 4, %s29
        %p363 = scmp.lt.s32.totalorder %s362, 3
        %s364 = scalar_select %p363, %s362, 3
        %s365 = smul.addr %s364, 8
        %s366 = scalar_lea.vmem %s1, %s365
        %p367 = pneg %p85
        %p368 = pneg %p82
        %s369 = smul.u32 4, %s29
        %p370 = scmp.lt.s32.totalorder %s369, 3
        %s371 = scalar_select %p370, %s369, 3
        %s372 = smul.addr %s371, 8
        %s373 = scalar_lea.vmem %s2, %s372
        %p374 = pneg %p111
        %p375 = pneg %p108
        %s376 = smul.u32 4, %s29
        %p377 = scmp.lt.s32.totalorder %s376, 3
        %s378 = scalar_select %p377, %s376, 3
        %s379 = smul.addr %s378, 8
        %s380 = scalar_lea.vmem %s3, %s379
        %p381 = pneg %p137
        %p382 = pneg %p134
        %s383 = smul.u32 4, %s29
        %p384 = scmp.lt.s32.totalorder %s383, 3
        %s385 = scalar_select %p384, %s383, 3
        %s386 = smul.addr %s385, 8
        %s387 = scalar_lea.vmem %s4, %s386
        %p388 = pneg %p163
        %p389 = pneg %p160
        %s390 = smul.u32 4, %s29
        %p391 = scmp.lt.s32.totalorder %s390, 3
        %s392 = scalar_select %p391, %s390, 3
        %s393 = smul.addr %s392, 8
        %s394 = scalar_lea.vmem %s5, %s393
        %p395 = pneg %p189
        %p396 = pneg %p186
        %s397 = smul.u32 4, %s29
        %p398 = scmp.lt.s32.totalorder %s397, 3
        %s399 = scalar_select %p398, %s397, 3
        %s400 = smul.addr %s399, 8
        %s401 = scalar_lea.vmem %s6, %s400
        %p402 = pneg %p215
        %p403 = pneg %p212
        %p404 = pneg %p243
        %p405 = pneg %p240
        %s406 = sand.u32 %s230, 1
        %s407 = scalar_lea.sflag [#allocation4], %s406
        %s408 = sand.u32 %s230, 1
        %s409 = smul.addr %s408, 128
        %s410 = scalar_lea.vmem [#allocation5], %s409
        %s411 = smul.u32 16, %s29
        %s412 = smul.u32 4, %s29
        %p413 = scmp.lt.s32.totalorder %s412, 3
        %s414 = scalar_select %p413, %s412, 3
        %s415 = smul.addr %s414, 8
        %s416 = scalar_lea.vmem %s1, %s415
        %s417 = smul.u32 4, %s29
        %s418 = smul.u32 4, %s29
        %p419 = scmp.lt.s32.totalorder %s418, 3
        %s420 = scalar_select %p419, %s418, 3
        %s421 = smul.addr %s420, 8
        %s422 = scalar_lea.vmem %s2, %s421
        %s423 = smul.u32 4, %s29
        %s424 = smul.u32 4, %s29
        %p425 = scmp.lt.s32.totalorder %s424, 3
        %s426 = scalar_select %p425, %s424, 3
        %s427 = smul.addr %s426, 8
        %s428 = scalar_lea.vmem %s3, %s427
        %s429 = smul.u32 4, %s29
        %s430 = smul.u32 4, %s29
        %p431 = scmp.lt.s32.totalorder %s430, 3
        %s432 = scalar_select %p431, %s430, 3
        %s433 = smul.addr %s432, 8
        %s434 = scalar_lea.vmem %s4, %s433
        %s435 = smul.u32 4, %s29
        %s436 = smul.u32 4, %s29
        %p437 = scmp.lt.s32.totalorder %s436, 3
        %s438 = scalar_select %p437, %s436, 3
        %s439 = smul.addr %s438, 8
        %s440 = scalar_lea.vmem %s5, %s439
        %s441 = smul.u32 4, %s29
        %s442 = smul.u32 4, %s29
        %p443 = scmp.lt.s32.totalorder %s442, 3
        %s444 = scalar_select %p443, %s442, 3
        %s445 = smul.addr %s444, 8
        %s446 = scalar_lea.vmem %s6, %s445
        %s447 = smul.u32 4, %s29
        %s448 = smul.u32 4, %s29
        %v449 = vld [vmem:[%s416] sm:$0xff]
        %v450 = vld [vmem:[%s416 + $0x8] sm:$0xff]
        %v451 = vld [vmem:[%s416 + $0x10] sm:$0xff]
        %v452 = vld [vmem:[%s416 + $0x18] sm:$0xff]
        %v453 = vld [vmem:[%s422] sm:$0xff]
        %v454 = vld [vmem:[%s422 + $0x8] sm:$0xff]
        %v455 = vld [vmem:[%s422 + $0x10] sm:$0xff]
        %v456 = vld [vmem:[%s422 + $0x18] sm:$0xff]
        %v457 = vld [vmem:[%s434] sm:$0xff]
        %v458 = vld [vmem:[%s434 + $0x8] sm:$0xff]
        %v459 = vld [vmem:[%s434 + $0x10] sm:$0xff]
        %v460 = vld [vmem:[%s434 + $0x18] sm:$0xff]
        %v461 = vld [vmem:[%s428] sm:$0xff]
        %v462 = vld [vmem:[%s428 + $0x8] sm:$0xff]
        %v463 = vld [vmem:[%s428 + $0x10] sm:$0xff]
        %v464 = vld [vmem:[%s428 + $0x18] sm:$0xff]
        %v465 = vmul.f32 %v461, 0.5
        %v466 = vmul.f32 %v462, 0.5
        %v467 = vmul.f32 %v463, 0.5
        %v468 = vmul.f32 %v464, 0.5
        %v469 = vld [vmem:[%s350] ss:$4 sm:$0xff]
        %s470 = scalar_lea.vmem %s350, 32 [#allocation2]
        %v471 = vld [vmem:[%s470] ss:$4 sm:$0xff]
        %s472 = scalar_lea.vmem %s350, 64 [#allocation2]
        %v473 = vld [vmem:[%s472] ss:$4 sm:$0xff]
        %s474 = scalar_lea.vmem %s350, 96 [#allocation2]
        %v475 = vld [vmem:[%s474] ss:$4 sm:$0xff]
        %476 = vadd.xlane.f32.xlu0 %v469
        %v477 = vpop.xlane.xlu0 %476
        %478 = vadd.xlane.f32.xlu0 %v471
        %v479 = vpop.xlane.xlu0 %478
        %480 = vadd.xlane.f32.xlu0 %v473
        %v481 = vpop.xlane.xlu0 %480
        %482 = vadd.xlane.f32.xlu0 %v475
        %v483 = vpop.xlane.xlu0 %482
        %v484 = vmul.f32 %v477, 0.0078125
        %v485 = vmul.f32 %v479, 0.0078125
        %v486 = vmul.f32 %v481, 0.0078125
        %v487 = vmul.f32 %v483, 0.0078125
        %v488 = vmul.f32 %v484, %v449
        %v489 = vmul.f32 %v485, %v450
        %v490 = vmul.f32 %v486, %v451
        %v491 = vmul.f32 %v487, %v452
        %v492 = vadd.f32 %v488, %v453
        %v493 = vadd.f32 %v489, %v454
        %v494 = vadd.f32 %v490, %v455
        %v495 = vadd.f32 %v491, %v456
        %v496 = vxor.u32 %v492, 2147483648
        %v497 = vxor.u32 %v493, 2147483648
        %v498 = vxor.u32 %v494, 2147483648
        %v499 = vxor.u32 %v495, 2147483648
        %v500 = vmul.f32 %v496, 1.442695
        %v501 = vpow.pop %v500
        %v502 = vmul.f32 %v497, 1.442695
        %v503 = vpow.pop %v502
        %v504 = vmul.f32 %v498, 1.442695
        %v505 = vpow.pop %v504
        %v506 = vmul.f32 %v499, 1.442695
        %v507 = vpow.pop %v506
        %v508 = vadd.f32 %v501, 1.0
        %v509 = vadd.f32 %v503, 1.0
        %v510 = vadd.f32 %v505, 1.0
        %v511 = vadd.f32 %v507, 1.0
        %v512 = vrcp.pop %v508
        %v513 = vmul.f32 1.0, %v512
        %v514 = vrcp.pop %v509
        %v515 = vmul.f32 1.0, %v514
        %v516 = vrcp.pop %v510
        %v517 = vmul.f32 1.0, %v516
        %v518 = vrcp.pop %v511
        %v519 = vmul.f32 1.0, %v518
        %s520 = scalar_lea.vmem %s350, 1 [#allocation2]
        %v521 = vld [vmem:[%s520] ss:$4 sm:$0xff]
        %s522 = scalar_lea.vmem %s350, 33 [#allocation2]
        %v523 = vld [vmem:[%s522] ss:$4 sm:$0xff]
        %s524 = scalar_lea.vmem %s350, 65 [#allocation2]
        %v525 = vld [vmem:[%s524] ss:$4 sm:$0xff]
        %s526 = scalar_lea.vmem %s350, 97 [#allocation2]
        %v527 = vld [vmem:[%s526] ss:$4 sm:$0xff]
        %528 = vadd.xlane.f32.xlu0 %v521
        %v529 = vpop.xlane.xlu0 %528
        %530 = vadd.xlane.f32.xlu0 %v523
        %v531 = vpop.xlane.xlu0 %530
        %532 = vadd.xlane.f32.xlu0 %v525
        %v533 = vpop.xlane.xlu0 %532
        %534 = vadd.xlane.f32.xlu0 %v527
        %v535 = vpop.xlane.xlu0 %534
        %v536 = vmul.f32 %v529, 0.0078125
        %v537 = vmul.f32 %v531, 0.0078125
        %v538 = vmul.f32 %v533, 0.0078125
        %v539 = vmul.f32 %v535, 0.0078125
        %v540 = vmul.f32 %v536, %v449
        %v541 = vmul.f32 %v537, %v450
        %v542 = vmul.f32 %v538, %v451
        %v543 = vmul.f32 %v539, %v452
        %v544 = vadd.f32 %v540, %v453
        %v545 = vadd.f32 %v541, %v454
        %v546 = vadd.f32 %v542, %v455
        %v547 = vadd.f32 %v543, %v456
        %v548 = vxor.u32 %v544, 2147483648
        %v549 = vxor.u32 %v545, 2147483648
        %v550 = vxor.u32 %v546, 2147483648
        %v551 = vxor.u32 %v547, 2147483648
        %v552 = vmul.f32 %v548, 1.442695
        %v553 = vpow.pop %v552
        %v554 = vmul.f32 %v549, 1.442695
        %v555 = vpow.pop %v554
        %v556 = vmul.f32 %v550, 1.442695
        %v557 = vpow.pop %v556
        %v558 = vmul.f32 %v551, 1.442695
        %v559 = vpow.pop %v558
        %v560 = vadd.f32 %v553, 1.0
        %v561 = vadd.f32 %v555, 1.0
        %v562 = vadd.f32 %v557, 1.0
        %v563 = vadd.f32 %v559, 1.0
        %v564 = vrcp.pop %v560
        %v565 = vmul.f32 1.0, %v564
        %v566 = vrcp.pop %v561
        %v567 = vmul.f32 1.0, %v566
        %v568 = vrcp.pop %v562
        %v569 = vmul.f32 1.0, %v568
        %v570 = vrcp.pop %v563
        %v571 = vmul.f32 1.0, %v570
        %s572 = scalar_lea.vmem %s350, 2 [#allocation2]
        %v573 = vld [vmem:[%s572] ss:$4 sm:$0xff]
        %s574 = scalar_lea.vmem %s350, 34 [#allocation2]
        %v575 = vld [vmem:[%s574] ss:$4 sm:$0xff]
        %s576 = scalar_lea.vmem %s350, 66 [#allocation2]
        %v577 = vld [vmem:[%s576] ss:$4 sm:$0xff]
        %s578 = scalar_lea.vmem %s350, 98 [#allocation2]
        %v579 = vld [vmem:[%s578] ss:$4 sm:$0xff]
        %580 = vadd.xlane.f32.xlu0 %v573
        %v581 = vpop.xlane.xlu0 %580
        %582 = vadd.xlane.f32.xlu0 %v575
        %v583 = vpop.xlane.xlu0 %582
        %584 = vadd.xlane.f32.xlu0 %v577
        %v585 = vpop.xlane.xlu0 %584
        %586 = vadd.xlane.f32.xlu0 %v579
        %v587 = vpop.xlane.xlu0 %586
        %v588 = vadd.f32 %v581, 0.0
        %v589 = vadd.f32 %v583, 0.0
        %v590 = vadd.f32 %v585, 0.0
        %v591 = vadd.f32 %v587, 0.0
        %v592 = vmul.f32 %v573, %v573
        %v593 = vmul.f32 %v575, %v575
        %v594 = vmul.f32 %v577, %v577
        %v595 = vmul.f32 %v579, %v579
        %596 = vadd.xlane.f32.xlu0 %v592
        %v597 = vpop.xlane.xlu0 %596
        %598 = vadd.xlane.f32.xlu0 %v593
        %v599 = vpop.xlane.xlu0 %598
        %600 = vadd.xlane.f32.xlu0 %v594
        %v601 = vpop.xlane.xlu0 %600
        %602 = vadd.xlane.f32.xlu0 %v595
        %v603 = vpop.xlane.xlu0 %602
        %v604 = vadd.f32 %v597, 0.0
        %v605 = vadd.f32 %v599, 0.0
        %v606 = vadd.f32 %v601, 0.0
        %v607 = vadd.f32 %v603, 0.0
        %s608 = scalar_lea.vmem %s350, 3 [#allocation2]
        %v609 = vld [vmem:[%s608] ss:$4 sm:$0xff]
        %s610 = scalar_lea.vmem %s350, 35 [#allocation2]
        %v611 = vld [vmem:[%s610] ss:$4 sm:$0xff]
        %s612 = scalar_lea.vmem %s350, 67 [#allocation2]
        %v613 = vld [vmem:[%s612] ss:$4 sm:$0xff]
        %s614 = scalar_lea.vmem %s350, 99 [#allocation2]
        %v615 = vld [vmem:[%s614] ss:$4 sm:$0xff]
        %616 = vadd.xlane.f32.xlu0 %v609
        %v617 = vpop.xlane.xlu0 %616
        %618 = vadd.xlane.f32.xlu0 %v611
        %v619 = vpop.xlane.xlu0 %618
        %620 = vadd.xlane.f32.xlu0 %v613
        %v621 = vpop.xlane.xlu0 %620
        %622 = vadd.xlane.f32.xlu0 %v615
        %v623 = vpop.xlane.xlu0 %622
        %v624 = vadd.f32 %v588, %v617
        %v625 = vadd.f32 %v589, %v619
        %v626 = vadd.f32 %v590, %v621
        %v627 = vadd.f32 %v591, %v623
        %v628 = vmul.f32 %v609, %v609
        %v629 = vmul.f32 %v611, %v611
        %v630 = vmul.f32 %v613, %v613
        %v631 = vmul.f32 %v615, %v615
        %632 = vadd.xlane.f32.xlu0 %v628
        %v633 = vpop.xlane.xlu0 %632
        %634 = vadd.xlane.f32.xlu0 %v629
        %v635 = vpop.xlane.xlu0 %634
        %636 = vadd.xlane.f32.xlu0 %v630
        %v637 = vpop.xlane.xlu0 %636
        %638 = vadd.xlane.f32.xlu0 %v631
        %v639 = vpop.xlane.xlu0 %638
        %v640 = vadd.f32 %v604, %v633
        %v641 = vadd.f32 %v605, %v635
        %v642 = vadd.f32 %v606, %v637
        %v643 = vadd.f32 %v607, %v639
        %v644 = vmul.f32 %v624, 0.00390625
        %v645 = vmul.f32 %v625, 0.00390625
        %v646 = vmul.f32 %v626, 0.00390625
        %v647 = vmul.f32 %v627, 0.00390625
        %v648 = vmul.f32 %v640, 0.00390625
        %v649 = vmul.f32 %v641, 0.00390625
        %v650 = vmul.f32 %v642, 0.00390625
        %v651 = vmul.f32 %v643, 0.00390625
        %v652 = vmul.f32 %v644, %v644
        %v653 = vmul.f32 %v645, %v645
        %v654 = vmul.f32 %v646, %v646
        %v655 = vmul.f32 %v647, %v647
        %v656 = vsub.f32 %v648, %v652
        %v657 = vsub.f32 %v649, %v653
        %v658 = vsub.f32 %v650, %v654
        %v659 = vsub.f32 %v651, %v655
        %v660 = vmax.f32 %v656, 0.0
        %v661 = vmax.f32 %v657, 0.0
        %v662 = vmax.f32 %v658, 0.0
        %v663 = vmax.f32 %v659, 0.0
        %v664 = vadd.f32 %v660, 1e-05
        %v665 = vadd.f32 %v661, 1e-05
        %v666 = vadd.f32 %v662, 1e-05
        %v667 = vadd.f32 %v663, 1e-05
        %v668 = vrsqrt.pop %v664
        %v669 = vrsqrt.pop %v665
        %v670 = vrsqrt.pop %v666
        %v671 = vrsqrt.pop %v667
        %v672 = vld [vmem:[%s440] sm:$0xff]
        %v673 = vld [vmem:[%s440 + $0x8] sm:$0xff]
        %v674 = vld [vmem:[%s440 + $0x10] sm:$0xff]
        %v675 = vld [vmem:[%s440 + $0x18] sm:$0xff]
        %vm676 = vcmask 15360
        %v677 = vsel %vm676, %v672, 0.0
        %678 = vadd.xlane.f32.xlu0 %v677
        %v679 = vpop.xlane.xlu0 %678
        %v680 = vsel %vm676, %v673, 0.0
        %681 = vadd.xlane.f32.xlu0 %v680
        %v682 = vpop.xlane.xlu0 %681
        %v683 = vsel %vm676, %v674, 0.0
        %684 = vadd.xlane.f32.xlu0 %v683
        %v685 = vpop.xlane.xlu0 %684
        %v686 = vsel %vm676, %v675, 0.0
        %687 = vadd.xlane.f32.xlu0 %v686
        %v688 = vpop.xlane.xlu0 %687
        %v689 = vld [vmem:[%s446] sm:$0xff]
        %v690 = vld [vmem:[%s446 + $0x8] sm:$0xff]
        %v691 = vld [vmem:[%s446 + $0x10] sm:$0xff]
        %v692 = vld [vmem:[%s446 + $0x18] sm:$0xff]
        %v693 = vsel %vm676, %v689, 0.0
        %694 = vadd.xlane.f32.xlu0 %v693
        %v695 = vpop.xlane.xlu0 %694
        %v696 = vsel %vm676, %v690, 0.0
        %697 = vadd.xlane.f32.xlu0 %v696
        %v698 = vpop.xlane.xlu0 %697
        %v699 = vsel %vm676, %v691, 0.0
        %700 = vadd.xlane.f32.xlu0 %v699
        %v701 = vpop.xlane.xlu0 %700
        %v702 = vsel %vm676, %v692, 0.0
        %703 = vadd.xlane.f32.xlu0 %v702
        %v704 = vpop.xlane.xlu0 %703
        %v705 = vmul.f32 %v668, %v465
        %v706 = vmul.f32 %v669, %v466
        %v707 = vmul.f32 %v670, %v467
        %v708 = vmul.f32 %v671, %v468
        %v709 = vmul.f32 %v705, %v672
        %v710 = vmul.f32 %v706, %v673
        %v711 = vmul.f32 %v707, %v674
        %v712 = vmul.f32 %v708, %v675
        %717 = vrot.lane.b32.xlu0 %v672, 127
        %v718 = vpop.permute.xlu0 %717
        %719 = vrot.lane.b32.xlu0 %v673, 127
        %v720 = vpop.permute.xlu0 %719
        %721 = vrot.lane.b32.xlu0 %v674, 127
        %v722 = vpop.permute.xlu0 %721
        %723 = vrot.lane.b32.xlu0 %v675, 127
        %v724 = vpop.permute.xlu0 %723
        %v729 = vmul.f32 %v705, %v718
        %v730 = vmul.f32 %v706, %v720
        %v731 = vmul.f32 %v707, %v722
        %v732 = vmul.f32 %v708, %v724
        %v733 = vmul.f32 %v668, %v644
        %v734 = vmul.f32 %v669, %v645
        %v735 = vmul.f32 %v670, %v646
        %v736 = vmul.f32 %v671, %v647
        %v737 = vmul.f32 %v733, %v679
        %v738 = vmul.f32 %v734, %v682
        %v739 = vmul.f32 %v735, %v685
        %v740 = vmul.f32 %v736, %v688
        %v741 = vsub.f32 %v695, %v737
        %v742 = vsub.f32 %v698, %v738
        %v743 = vsub.f32 %v701, %v739
        %v744 = vsub.f32 %v704, %v740
        %v745 = vmul.f32 %v741, %v465
        %v746 = vmul.f32 %v742, %v466
        %v747 = vmul.f32 %v743, %v467
        %v748 = vmul.f32 %v744, %v468
        %v749 = vadd.f32 %v745, %v457
        %v750 = vadd.f32 %v746, %v458
        %v751 = vadd.f32 %v747, %v459
        %v752 = vadd.f32 %v748, %v460
        %754 = vset.pattern.permute.xlu0 0
        %755 = vperm.xlu0 %754, %v513
        %v756 = vpop.permute.xlu0 %755
        %759 = vset.pattern.permute.xlu0 0
        %760 = vperm.xlu0 %759, %v515
        %v761 = vpop.permute.xlu0 %760
        %764 = vset.pattern.permute.xlu0 0
        %765 = vperm.xlu0 %764, %v517
        %v766 = vpop.permute.xlu0 %765
        %769 = vset.pattern.permute.xlu0 0
        %770 = vperm.xlu0 %769, %v519
        %v771 = vpop.permute.xlu0 %770
        %v773 = vmul.f32 %v469, %v756
        %v774 = vmul.f32 %v471, %v761
        %v775 = vmul.f32 %v473, %v766
        %v776 = vmul.f32 %v475, %v771
        %777 = vst [vmem:[%s410] sm:$0xff] %v773
        %778 = vst [vmem:[%s410 + $0x8] sm:$0xff] %v774
        %779 = vst [vmem:[%s410 + $0x10] sm:$0xff] %v775
        %780 = vst [vmem:[%s410 + $0x18] sm:$0xff] %v776
        %v781 = vld [vmem:[%s520] ss:$4 sm:$0xff]
        %v782 = vld [vmem:[%s522] ss:$4 sm:$0xff]
        %v783 = vld [vmem:[%s524] ss:$4 sm:$0xff]
        %v784 = vld [vmem:[%s526] ss:$4 sm:$0xff]
        %786 = vset.pattern.permute.xlu0 0
        %787 = vperm.xlu0 %786, %v565
        %v788 = vpop.permute.xlu0 %787
        %791 = vset.pattern.permute.xlu0 0
        %792 = vperm.xlu0 %791, %v567
        %v793 = vpop.permute.xlu0 %792
        %796 = vset.pattern.permute.xlu0 0
        %797 = vperm.xlu0 %796, %v569
        %v798 = vpop.permute.xlu0 %797
        %801 = vset.pattern.permute.xlu0 0
        %802 = vperm.xlu0 %801, %v571
        %v803 = vpop.permute.xlu0 %802
        %v805 = vmul.f32 %v781, %v788
        %v806 = vmul.f32 %v782, %v793
        %v807 = vmul.f32 %v783, %v798
        %v808 = vmul.f32 %v784, %v803
        %s809 = scalar_lea.vmem %s410, 32 [#allocation5]
        %810 = vst [vmem:[%s809] sm:$0xff] %v805
        %811 = vst [vmem:[%s809 + $0x8] sm:$0xff] %v806
        %812 = vst [vmem:[%s809 + $0x10] sm:$0xff] %v807
        %813 = vst [vmem:[%s809 + $0x18] sm:$0xff] %v808
        %v814 = vld [vmem:[%s572] ss:$4 sm:$0xff]
        %v815 = vld [vmem:[%s574] ss:$4 sm:$0xff]
        %v816 = vld [vmem:[%s576] ss:$4 sm:$0xff]
        %v817 = vld [vmem:[%s578] ss:$4 sm:$0xff]
        %819 = vset.pattern.permute.xlu0 0
        %820 = vperm.xlu0 %819, %v709
        %v821 = vpop.permute.xlu0 %820
        %824 = vset.pattern.permute.xlu0 0
        %825 = vperm.xlu0 %824, %v710
        %v826 = vpop.permute.xlu0 %825
        %829 = vset.pattern.permute.xlu0 0
        %830 = vperm.xlu0 %829, %v711
        %v831 = vpop.permute.xlu0 %830
        %834 = vset.pattern.permute.xlu0 0
        %835 = vperm.xlu0 %834, %v712
        %v836 = vpop.permute.xlu0 %835
        %v838 = vmul.f32 %v814, %v821
        %v839 = vmul.f32 %v815, %v826
        %v840 = vmul.f32 %v816, %v831
        %v841 = vmul.f32 %v817, %v836
        %v842 = vld [vmem:[%s608] ss:$4 sm:$0xff]
        %v843 = vld [vmem:[%s610] ss:$4 sm:$0xff]
        %v844 = vld [vmem:[%s612] ss:$4 sm:$0xff]
        %v845 = vld [vmem:[%s614] ss:$4 sm:$0xff]
        %847 = vset.pattern.permute.xlu0 0
        %848 = vperm.xlu0 %847, %v729
        %v849 = vpop.permute.xlu0 %848
        %852 = vset.pattern.permute.xlu0 0
        %853 = vperm.xlu0 %852, %v730
        %v854 = vpop.permute.xlu0 %853
        %857 = vset.pattern.permute.xlu0 0
        %858 = vperm.xlu0 %857, %v731
        %v859 = vpop.permute.xlu0 %858
        %862 = vset.pattern.permute.xlu0 0
        %863 = vperm.xlu0 %862, %v732
        %v864 = vpop.permute.xlu0 %863
        %v866 = vmul.f32 %v842, %v849
        %v867 = vmul.f32 %v843, %v854
        %v868 = vmul.f32 %v844, %v859
        %v869 = vmul.f32 %v845, %v864
        %v870 = vadd.f32 %v838, %v866
        %v871 = vadd.f32 %v839, %v867
        %v872 = vadd.f32 %v840, %v868
        %v873 = vadd.f32 %v841, %v869
        %875 = vset.pattern.permute.xlu0 0
        %876 = vperm.xlu0 %875, %v749
        %v877 = vpop.permute.xlu0 %876
        %880 = vset.pattern.permute.xlu0 0
        %881 = vperm.xlu0 %880, %v750
        %v882 = vpop.permute.xlu0 %881
        %885 = vset.pattern.permute.xlu0 0
        %886 = vperm.xlu0 %885, %v751
        %v887 = vpop.permute.xlu0 %886
        %890 = vset.pattern.permute.xlu0 0
        %891 = vperm.xlu0 %890, %v752
        %v892 = vpop.permute.xlu0 %891
        %v894 = vadd.f32 %v870, %v877
        %v895 = vadd.f32 %v871, %v882
        %v896 = vadd.f32 %v872, %v887
        %v897 = vadd.f32 %v873, %v892
        %v898 = vxor.u32 %v894, 2147483648
        %v899 = vxor.u32 %v895, 2147483648
        %v900 = vxor.u32 %v896, 2147483648
        %v901 = vxor.u32 %v897, 2147483648
        %v902 = vmul.f32 %v898, 1.442695
        %v903 = vpow.pop %v902
        %v904 = vmul.f32 %v899, 1.442695
        %v905 = vpow.pop %v904
        %v906 = vmul.f32 %v900, 1.442695
        %v907 = vpow.pop %v906
        %v908 = vmul.f32 %v901, 1.442695
        %v909 = vpow.pop %v908
        %v910 = vadd.f32 %v903, 1.0
        %v911 = vadd.f32 %v905, 1.0
        %v912 = vadd.f32 %v907, 1.0
        %v913 = vadd.f32 %v909, 1.0
        %v914 = vrcp.pop %v910
        %v915 = vmul.f32 1.0, %v914
        %v916 = vrcp.pop %v911
        %v917 = vmul.f32 1.0, %v916
        %v918 = vrcp.pop %v912
        %v919 = vmul.f32 1.0, %v918
        %v920 = vrcp.pop %v913
        %v921 = vmul.f32 1.0, %v920
        %v922 = vmul.f32 %v814, %v915
        %v923 = vmul.f32 %v815, %v917
        %v924 = vmul.f32 %v816, %v919
        %v925 = vmul.f32 %v817, %v921
        %s926 = scalar_lea.vmem %s410, 64 [#allocation5]
        %927 = vst [vmem:[%s926] sm:$0xff] %v922
        %928 = vst [vmem:[%s926 + $0x8] sm:$0xff] %v923
        %929 = vst [vmem:[%s926 + $0x10] sm:$0xff] %v924
        %930 = vst [vmem:[%s926 + $0x18] sm:$0xff] %v925
        %v931 = vld [vmem:[%s608] ss:$4 sm:$0xff]
        %v932 = vld [vmem:[%s610] ss:$4 sm:$0xff]
        %v933 = vld [vmem:[%s612] ss:$4 sm:$0xff]
        %v934 = vld [vmem:[%s614] ss:$4 sm:$0xff]
        %v935 = vmul.f32 %v931, %v915
        %v936 = vmul.f32 %v932, %v917
        %v937 = vmul.f32 %v933, %v919
        %v938 = vmul.f32 %v934, %v921
        %s939 = scalar_lea.vmem %s410, 96 [#allocation5]
        %940 = vst [vmem:[%s939] sm:$0xff] %v935
        %941 = vst [vmem:[%s939 + $0x8] sm:$0xff] %v936
        %942 = vst [vmem:[%s939 + $0x10] sm:$0xff] %v937
        %943 = vst [vmem:[%s939 + $0x18] sm:$0xff] %v938
        %s944 = sand.u32 %s230, 1
        %s945 = scalar_lea.sflag [#allocation4], %s944
        %s946 = sand.u32 %s230, 1
        %s947 = smul.addr %s946, 128
        %s948 = scalar_lea.vmem [#allocation5], %s947
        // Predicated region
        $region53: #{tpu_custom_call.1} parent=47 // pred_check
          %p949 = pneg %p240
        $region54: #{tpu_custom_call.1} parent=47 // pred_check_branch
          %951 = sbr.rel (%p949) target = $region56
        $region55: #{tpu_custom_call.1} parent=47 // pred_region
          %s952 = smul.u32 4, %s29
          %s954 = ssub.s32 2048, 2048
          %955 = vsyncadd %s945, %s954
          %s956 = smul.addr %s28, 16
          %s957 = sadd.s32 %s952, %s956
          %s958 = smul.addr %s957, 128
          %s959 = scalar_lea.hbm %s7, %s958
          %s960 = sshll.u32 %s948, 4
          %s961 = int_to_ptr.vmem [resolvable:$true] %s960
          %966 = dma.vmem_to_hbm [thread:$0]  %s961, 2048, %s959, %s945, 128, 128, 8
        $region56: #{tpu_custom_call.1} parent=47 // pred_fallthru
          _
      $region48: #{tpu_custom_call.1} parent=5 // pred_fallthru
        _
      %p967 = scmp.le.s32.totalorder 2, %s19
      // Predicated region
      $region57: #{tpu_custom_call.1} parent=5 // pred_check
        %p968 = pneg %p967
      $region58: #{tpu_custom_call.1} parent=5 // pred_check_branch
        %970 = sbr.rel (%p968) target = $region60
      $region59: #{tpu_custom_call.1} parent=5 // pred_region
        %s971 = ssub.s32 %s19, 2
        // Predicated region
        $region61: #{tpu_custom_call.1} parent=59 // pred_check
          %p972 = pneg %p246
        $region62: #{tpu_custom_call.1} parent=59 // pred_check_branch
          %974 = sbr.rel (%p972) target = $region64
        $region63: #{tpu_custom_call.1} parent=59 // pred_region
          %s975 = sand.u32 %s231, 1
          %s976 = scalar_lea.sflag [#allocation4], %s975
          %s977 = sand.u32 %s231, 1
          %s978 = smul.addr %s977, 128
          %s979 = scalar_lea.vmem [#allocation5], %s978
          %980 = dma.done %s976, 2048
        $region64: #{tpu_custom_call.1} parent=59 // pred_fallthru
          _
      $region60: #{tpu_custom_call.1} parent=5 // pred_fallthru
        _
    $region6: #{tpu_custom_call.1} parent=1 // loop_footer
      %s23 = sadd.s32 1, %s19
    $region7: #{tpu_custom_call.1} parent=1 // loop_footer_branch
      %18 = sbr.rel target = $region3
    $region8: #{tpu_custom_call.1} parent=1 // loop_exit
      _
    %981 = vsyncpa [#allocation3], 1
    %s982 = scalar_lea.sflag [#allocation3], 1
    %983 = vsyncpa %s982, 1
    %984 = vsyncpa [#allocation4], 1
    %s985 = scalar_lea.sflag [#allocation4], 1
    %986 = vsyncpa %s985, 1

</llo_original>
